<compile_context>
chip_gen: v6e
topology: v6e:2x2x1
jax: 0.10.0
libtpu: 0.0.40
codegen_flags: <defaults>
</compile_context>

<pallas_src>
import functools

import jax
import jax.numpy as jnp
from jax.experimental import pallas as pl
from jax.experimental.pallas import tpu as pltpu


def _round_up(n, m):
    return ((n + m - 1) // m) * m


def mlp_kernel(x_ref, w1_ref, b1_ref, w2_ref, b2_ref, w3_ref, b3_ref, o_ref):
    # Layer 1: (tm, KP) @ (KP, 512) -> f32 accum on MXU, bias + ReLU in f32.
    h1 = jnp.dot(x_ref[...], w1_ref[...],
                 preferred_element_type=jnp.float32) + b1_ref[...]
    h1 = jnp.maximum(h1, 0.0)                                   # ReLU
    # Dropout(0.5): identity in eval mode.
    h2 = jnp.dot(h1.astype(w2_ref.dtype), w2_ref[...],
                 preferred_element_type=jnp.float32) + b2_ref[...]
    h2 = jnp.maximum(h2, 0.0)                                   # ReLU
    # Dropout(0.5): identity in eval mode.
    o_ref[...] = (jnp.dot(h2.astype(w3_ref.dtype), w3_ref[...],
                          preferred_element_type=jnp.float32)
                  + b3_ref[...]).astype(o_ref.dtype)


@functools.partial(jax.jit, static_argnames=("tm", "compute_dtype"))
def neural_network_forward(x, params, *, tm=512, compute_dtype=jnp.bfloat16):
    """x: (B, *) flattened to (B, 6). Returns f32 logits (B, 3)."""
    w1, b1, w2, b2, w3, b3 = params

    B = x.shape[0]
    x2 = x.reshape(B, -1)                                       # nn.Flatten
    K = x2.shape[1]
    assert K == 6, "flattened feature dim must be 6"

    KP = 16    # padded contraction dim for layer 1 (true K = 6, bf16 sublane-pack)
    NP = 128   # lane-dense padded output width (true width = 3)
    H = 512

    # Batch tile: multiple of 8 sublanes, never larger than the (padded) batch.
    tm_eff = _round_up(min(tm, _round_up(B, 8)), 8)
    Bp = _round_up(B, tm_eff)

    # Zero-pad input (batch -> Bp, features -> KP); extra zeros contribute 0.
    xp = jnp.zeros((Bp, KP), compute_dtype).at[:B, :K].set(x2.astype(compute_dtype))

    # Zero-pad W1 along K and W3/b3 along N (lane-dense output).
    w1p = jnp.zeros((KP, H), compute_dtype).at[:K, :].set(w1.astype(compute_dtype))
    w2c = w2.astype(compute_dtype)
    w3p = jnp.zeros((H, NP), compute_dtype).at[:, :3].set(w3.astype(compute_dtype))
    b1c = b1.reshape(1, -1).astype(jnp.float32)
    b2c = b2.reshape(1, -1).astype(jnp.float32)
    b3p = jnp.zeros((1, NP), jnp.float32).at[:, :3].set(
        b3.reshape(1, -1).astype(jnp.float32))

    grid = (Bp // tm_eff,)

    out = pl.pallas_call(
        mlp_kernel,
        out_shape=jax.ShapeDtypeStruct((Bp, NP), jnp.float32),
        grid_spec=pltpu.PrefetchScalarGridSpec(
            num_scalar_prefetch=0,
            grid=grid,
            in_specs=[
                pl.BlockSpec((tm_eff, KP), lambda i: (i, 0)),   # x tile (bf16)
                pl.BlockSpec((KP, H), lambda i: (0, 0)),        # W1 (VMEM-resident)
                pl.BlockSpec((1, H), lambda i: (0, 0)),         # b1 (f32)
                pl.BlockSpec((H, H), lambda i: (0, 0)),         # W2 (VMEM-resident)
                pl.BlockSpec((1, H), lambda i: (0, 0)),         # b2 (f32)
                pl.BlockSpec((H, NP), lambda i: (0, 0)),        # W3 padded to 128 cols
                pl.BlockSpec((1, NP), lambda i: (0, 0)),        # b3 padded to 128 cols
            ],
            out_specs=pl.BlockSpec((tm_eff, NP), lambda i: (i, 0)),  # lane-dense out
        ),
        compiler_params=pltpu.CompilerParams(
            dimension_semantics=("parallel",),
        ),
    )(xp, w1p, b1c, w2c, b2c, w3p, b3p)

    return out[:B, :3]


def init_params(key):
    """Deterministic init mimicking PyTorch nn.Linear defaults
    (uniform(-1/sqrt(fan_in), 1/sqrt(fan_in)) for weight and bias)."""
    def linear(key, fan_in, fan_out):
        kw, kb = jax.random.split(key)
        bound = 1.0 / jnp.sqrt(fan_in)
        w = jax.random.uniform(kw, (fan_in, fan_out), jnp.float32, -bound, bound)
        b = jax.random.uniform(kb, (1, fan_out), jnp.float32, -bound, bound)
        return w, b

    k1, k2, k3 = jax.random.split(key, 3)
    w1, b1 = linear(k1, 6, 512)
    w2, b2 = linear(k2, 512, 512)
    w3, b3 = linear(k3, 512, 3)
    return w1, b1, w2, b2, w3, b3


def reference_forward(x, params, compute_dtype=jnp.bfloat16):
    """Plain-JAX reference with the same numerics (bf16 matmul inputs, f32 accum)."""
    w1, b1, w2, b2, w3, b3 = params
    xf = x.reshape(x.shape[0], -1)
    h = jnp.maximum(jnp.dot(xf.astype(compute_dtype), w1.astype(compute_dtype),
                            preferred_element_type=jnp.float32)
                    + b1.reshape(1, -1), 0.0)
    h = jnp.maximum(jnp.dot(h.astype(compute_dtype), w2.astype(compute_dtype),
                            preferred_element_type=jnp.float32)
                    + b2.reshape(1, -1), 0.0)
    return jnp.dot(h.astype(compute_dtype), w3.astype(compute_dtype),
                   preferred_element_type=jnp.float32) + b3.reshape(1, -1)


if __name__ == "__main__":
    key = jax.random.PRNGKey(0)
    kp, kx = jax.random.split(key)

    params = init_params(kp)

    # Small example input: batch=8, (2,3) trailing dims -> Flatten -> 6 features.
    x = jax.random.normal(kx, (8, 2, 3), jnp.float32)

    logits = neural_network_forward(x, params)
    jax.block_until_ready(logits)

    ref = reference_forward(x, params)
    assert logits.shape == (8, 3)
    assert jnp.allclose(logits, ref, atol=2e-2, rtol=2e-2)

    # Ragged batch (exercises wrapper-side padding path).
    x5 = x[:5]
    logits5 = neural_network_forward(x5, params)
    jax.block_until_ready(logits5)
    assert logits5.shape == (5, 3)
    assert jnp.allclose(logits5, ref[:5], atol=2e-2, rtol=2e-2)

    print("KERNEL_OK")
</pallas_src>

<mosaic_0001>
module attributes {stable_mosaic.version = 11 : i64} {
  func.func @mlp_kernel(%arg0: i32, %arg1: memref<8x16xbf16, #tpu.memory_space<vmem>>, %arg2: memref<16x512xbf16, #tpu.memory_space<vmem>>, %arg3: memref<1x512xf32, #tpu.memory_space<vmem>>, %arg4: memref<512x512xbf16, #tpu.memory_space<vmem>>, %arg5: memref<1x512xf32, #tpu.memory_space<vmem>>, %arg6: memref<512x128xbf16, #tpu.memory_space<vmem>>, %arg7: memref<1x128xf32, #tpu.memory_space<vmem>>, %arg8: memref<8x128xf32, #tpu.memory_space<vmem>>) attributes {dimension_semantics = [#tpu.dimension_semantics<parallel>], iteration_bounds = array<i64: 1>, scalar_prefetch = 0 : i64, scratch_operands = 0 : i64, tpu.core_type = #tpu.core_type<tc>, window_params = [{transform_indices = @transform_0, window_bounds = array<i64: 8, 16>}, {pipeline_mode = #tpu.pipeline_mode<synchronous>, transform_indices = @transform_1, window_bounds = array<i64: 16, 512>}, {pipeline_mode = #tpu.pipeline_mode<synchronous>, transform_indices = @transform_2, window_bounds = array<i64: 1, 512>}, {pipeline_mode = #tpu.pipeline_mode<synchronous>, transform_indices = @transform_3, window_bounds = array<i64: 512, 512>}, {pipeline_mode = #tpu.pipeline_mode<synchronous>, transform_indices = @transform_4, window_bounds = array<i64: 1, 512>}, {pipeline_mode = #tpu.pipeline_mode<synchronous>, transform_indices = @transform_5, window_bounds = array<i64: 512, 128>}, {pipeline_mode = #tpu.pipeline_mode<synchronous>, transform_indices = @transform_6, window_bounds = array<i64: 1, 128>}, {transform_indices = @transform_7, window_bounds = array<i64: 8, 128>}]} {
    %c0 = arith.constant 0 : index
    %c0_0 = arith.constant 0 : index
    %0 = vector.load %arg1[%c0, %c0_0] : memref<8x16xbf16, #tpu.memory_space<vmem>>, vector<8x16xbf16>
    %c0_1 = arith.constant 0 : index
    %c0_2 = arith.constant 0 : index
    %1 = vector.load %arg2[%c0_1, %c0_2] : memref<16x512xbf16, #tpu.memory_space<vmem>>, vector<16x512xbf16>
    %cst = arith.constant dense<0.000000e+00> : vector<8x512xf32>
    %2 = tpu.matmul %0, %1, %cst {dimension_numbers = #tpu.dot_dimension_numbers<[1], [0], [0], [1], [0, 0, 1, 1], [], []>} : vector<8x16xbf16>, vector<16x512xbf16>, vector<8x512xf32> -> vector<8x512xf32>
    %c0_3 = arith.constant 0 : index
    %c0_4 = arith.constant 0 : index
    %3 = vector.load %arg3[%c0_3, %c0_4] : memref<1x512xf32, #tpu.memory_space<vmem>>, vector<1x512xf32>
    %4 = vector.broadcast %3 : vector<1x512xf32> to vector<8x512xf32>
    %5 = arith.addf %2, %4 : vector<8x512xf32>
    %cst_5 = arith.constant 0.000000e+00 : f32
    %6 = vector.broadcast %cst_5 : f32 to vector<8x512xf32>
    %7 = arith.maximumf %5, %6 : vector<8x512xf32>
    %8 = arith.truncf %7 : vector<8x512xf32> to vector<8x512xbf16>
    %c0_6 = arith.constant 0 : index
    %c0_7 = arith.constant 0 : index
    %9 = vector.load %arg4[%c0_6, %c0_7] : memref<512x512xbf16, #tpu.memory_space<vmem>>, vector<512x512xbf16>
    %cst_8 = arith.constant dense<0.000000e+00> : vector<8x512xf32>
    %10 = tpu.matmul %8, %9, %cst_8 {dimension_numbers = #tpu.dot_dimension_numbers<[1], [0], [0], [1], [0, 0, 1, 1], [], []>} : vector<8x512xbf16>, vector<512x512xbf16>, vector<8x512xf32> -> vector<8x512xf32>
    %c0_9 = arith.constant 0 : index
    %c0_10 = arith.constant 0 : index
    %11 = vector.load %arg5[%c0_9, %c0_10] : memref<1x512xf32, #tpu.memory_space<vmem>>, vector<1x512xf32>
    %12 = vector.broadcast %11 : vector<1x512xf32> to vector<8x512xf32>
    %13 = arith.addf %10, %12 : vector<8x512xf32>
    %cst_11 = arith.constant 0.000000e+00 : f32
    %14 = vector.broadcast %cst_11 : f32 to vector<8x512xf32>
    %15 = arith.maximumf %13, %14 : vector<8x512xf32>
    %16 = arith.truncf %15 : vector<8x512xf32> to vector<8x512xbf16>
    %c0_12 = arith.constant 0 : index
    %c0_13 = arith.constant 0 : index
    %17 = vector.load %arg6[%c0_12, %c0_13] : memref<512x128xbf16, #tpu.memory_space<vmem>>, vector<512x128xbf16>
    %cst_14 = arith.constant dense<0.000000e+00> : vector<8x128xf32>
    %18 = tpu.matmul %16, %17, %cst_14 {dimension_numbers = #tpu.dot_dimension_numbers<[1], [0], [0], [1], [0, 0, 1, 1], [], []>} : vector<8x512xbf16>, vector<512x128xbf16>, vector<8x128xf32> -> vector<8x128xf32>
    %c0_15 = arith.constant 0 : index
    %c0_16 = arith.constant 0 : index
    %19 = vector.load %arg7[%c0_15, %c0_16] : memref<1x128xf32, #tpu.memory_space<vmem>>, vector<1x128xf32>
    %20 = vector.broadcast %19 : vector<1x128xf32> to vector<8x128xf32>
    %21 = arith.addf %18, %20 : vector<8x128xf32>
    %c0_17 = arith.constant 0 : index
    %c0_18 = arith.constant 0 : index
    %22 = vector.load %arg8[%c0_17, %c0_18] : memref<8x128xf32, #tpu.memory_space<vmem>>, vector<8x128xf32>
    tpu.vector_store %arg8[%c0_17, %c0_18], %21 {strides = array<i32>} : memref<8x128xf32, #tpu.memory_space<vmem>>, vector<8x128xf32>,
    return
  }
  func.func @transform_0(%arg0: i32) -> (i32, i32) {
    %c0_i32 = arith.constant 0 : i32
    %c0_i32_0 = arith.constant 0 : i32
    return %arg0, %c0_i32 : i32, i32
  }
  func.func @transform_1(%arg0: i32) -> (i32, i32) {
    %c0_i32 = arith.constant 0 : i32
    %c0_i32_0 = arith.constant 0 : i32
    %c0_i32_1 = arith.constant 0 : i32
    return %c0_i32, %c0_i32_0 : i32, i32
  }
  func.func @transform_2(%arg0: i32) -> (i32, i32) {
    %c0_i32 = arith.constant 0 : i32
    %c0_i32_0 = arith.constant 0 : i32
    %c0_i32_1 = arith.constant 0 : i32
    return %c0_i32, %c0_i32_0 : i32, i32
  }
  func.func @transform_3(%arg0: i32) -> (i32, i32) {
    %c0_i32 = arith.constant 0 : i32
    %c0_i32_0 = arith.constant 0 : i32
    %c0_i32_1 = arith.constant 0 : i32
    return %c0_i32, %c0_i32_0 : i32, i32
  }
  func.func @transform_4(%arg0: i32) -> (i32, i32) {
    %c0_i32 = arith.constant 0 : i32
    %c0_i32_0 = arith.constant 0 : i32
    %c0_i32_1 = arith.constant 0 : i32
    return %c0_i32, %c0_i32_0 : i32, i32
  }
  func.func @transform_5(%arg0: i32) -> (i32, i32) {
    %c0_i32 = arith.constant 0 : i32
    %c0_i32_0 = arith.constant 0 : i32
    %c0_i32_1 = arith.constant 0 : i32
    return %c0_i32, %c0_i32_0 : i32, i32
  }
  func.func @transform_6(%arg0: i32) -> (i32, i32) {
    %c0_i32 = arith.constant 0 : i32
    %c0_i32_0 = arith.constant 0 : i32
    %c0_i32_1 = arith.constant 0 : i32
    return %c0_i32, %c0_i32_0 : i32, i32
  }
  func.func @transform_7(%arg0: i32) -> (i32, i32) {
    %c0_i32 = arith.constant 0 : i32
    %c0_i32_0 = arith.constant 0 : i32
    return %arg0, %c0_i32 : i32, i32
  }
}

</mosaic_0001>

<llo_original>
// kernel: neural_network_forward.1
$region0: #{neural_network_forward.1}
  #allocation0 [shape = 'u32[]', space=smem, size = 0x4, offset = 0x4, fixed_abs, tag = 'smem constant byte address 0x4 - core index']
  #allocation1 [shape = 'u32[144,128]{1,0:T(1,128)}', space=vmem, size = 0x12000, scoped, tag = 'internal scratch']
  %s0 = inlined_call_operand.vmem [shape: bf16[8,16], index: 0, kind: input, shape index: {}]
  %s1 = inlined_call_operand.vmem [shape: bf16[16,512], index: 1, kind: input, shape index: {}]
  %s2 = inlined_call_operand.vmem [shape: f32[1,512], index: 2, kind: input, shape index: {}]
  %s3 = inlined_call_operand.vmem [shape: bf16[512,512], index: 3, kind: input, shape index: {}]
  %s4 = inlined_call_operand.vmem [shape: f32[1,512], index: 4, kind: input, shape index: {}]
  %s5 = inlined_call_operand.vmem [shape: bf16[512,128], index: 5, kind: input, shape index: {}]
  %s6 = inlined_call_operand.vmem [shape: f32[1,128], index: 6, kind: input, shape index: {}]
  %s7 = inlined_call_operand.vmem [shape: f32[8,128], index: 7, kind: output, shape index: {}]
  %s8 = sld [smem:[#allocation0]]
  $region38: #{neural_network_forward.1} parent=0
    _
  %s10 = ssub.s32 1, %s8
  %s11 = scalar_select 0, %s10, %s8
  // Predicated region
  $region2: #{neural_network_forward.1} parent=0 // pred_check
    _
  $region3: #{neural_network_forward.1} parent=0 // pred_check_branch
    %13 = sbr.rel (0) target = $region5
  $region4: #{neural_network_forward.1} parent=0 // pred_region
    _
  $region5: #{neural_network_forward.1} parent=0 // pred_fallthru
    _
  // Predicated region
  $region6: #{neural_network_forward.1} parent=0 // pred_check
    _
  $region7: #{neural_network_forward.1} parent=0 // pred_check_branch
    %15 = sbr.rel (0) target = $region9
  $region8: #{neural_network_forward.1} parent=0 // pred_region
    _
  $region9: #{neural_network_forward.1} parent=0 // pred_fallthru
    _
  // Predicated region
  $region10: #{neural_network_forward.1} parent=0 // pred_check
    _
  $region11: #{neural_network_forward.1} parent=0 // pred_check_branch
    %17 = sbr.rel (0) target = $region13
  $region12: #{neural_network_forward.1} parent=0 // pred_region
    _
  $region13: #{neural_network_forward.1} parent=0 // pred_fallthru
    _
  // Predicated region
  $region14: #{neural_network_forward.1} parent=0 // pred_check
    _
  $region15: #{neural_network_forward.1} parent=0 // pred_check_branch
    %19 = sbr.rel (0) target = $region17
  $region16: #{neural_network_forward.1} parent=0 // pred_region
    _
  $region17: #{neural_network_forward.1} parent=0 // pred_fallthru
    _
  // Predicated region
  $region18: #{neural_network_forward.1} parent=0 // pred_check
    _
  $region19: #{neural_network_forward.1} parent=0 // pred_check_branch
    %21 = sbr.rel (0) target = $region21
  $region20: #{neural_network_forward.1} parent=0 // pred_region
    _
  $region21: #{neural_network_forward.1} parent=0 // pred_fallthru
    _
  // Predicated region
  $region22: #{neural_network_forward.1} parent=0 // pred_check
    _
  $region23: #{neural_network_forward.1} parent=0 // pred_check_branch
    %23 = sbr.rel (0) target = $region25
  $region24: #{neural_network_forward.1} parent=0 // pred_region
    _
  $region25: #{neural_network_forward.1} parent=0 // pred_fallthru
    _
  // Predicated region
  $region26: #{neural_network_forward.1} parent=0 // pred_check
    _
  $region27: #{neural_network_forward.1} parent=0 // pred_check_branch
    %25 = sbr.rel (0) target = $region29
  $region28: #{neural_network_forward.1} parent=0 // pred_region
    _
  $region29: #{neural_network_forward.1} parent=0 // pred_fallthru
    _
  %v27 = vld [vmem:[%s0] sm:$0xf]
  %v28 = vld [vmem:[%s1] sm:$0xff]
  %v29 = vld [vmem:[%s1 + $0x8] sm:$0xff]
  %v30 = vld [vmem:[%s1 + $0x10] sm:$0xff]
  %v31 = vld [vmem:[%s1 + $0x18] sm:$0xff]
  %v32 = vld [vmem:[%s2] sm:$0xf]
  %v34 = vlaneseq
  %v35 = vshrl.u32 %v34, 7
  %v36 = vsub.s32 0, %v35
  %v37 = vrot.slane %v32, %v36
  %v38 = vlaneseq
  %v39 = vshrl.u32 %v38, 7
  %v40 = vsub.s32 1, %v39
  %v41 = vrot.slane %v32, %v40
  %v42 = vlaneseq
  %v43 = vshrl.u32 %v42, 7
  %v44 = vsub.s32 2, %v43
  %v45 = vrot.slane %v32, %v44
  %v46 = vlaneseq
  %v47 = vshrl.u32 %v46, 7
  %v48 = vsub.s32 3, %v47
  %v49 = vrot.slane %v32, %v48
  %v58 = vunpack.c.l.b16 %v28
  %v59 = vunpack.c.h.b16 %v28
  %v60 = vunpack.c.l.b16 %v29
  %v61 = vunpack.c.h.b16 %v29
  %v62 = vunpack.c.l.b16 %v30
  %v63 = vunpack.c.h.b16 %v30
  %v64 = vunpack.c.l.b16 %v31
  %v65 = vunpack.c.h.b16 %v31
  %v66 = vpack.c.b16 %v62, %v58
  %v67 = vpack.c.b16 %v63, %v59
  %v68 = vpack.c.b16 %v64, %v60
  %v69 = vpack.c.b16 %v65, %v61
  %vm74 = vcmask 130048
  %v76 = vsel %vm74, %v27, 0
  %78 = vmatprep.subr.bf16.mxu0 0
  %79 = vmatpush1.bf16.msra.mxu0 0
  %80 = vmatprep.subr.bf16.mxu0 0
  %81 = vmatpush1.bf16.msra.mxu0 0
  %82 = vmatprep.subr.bf16.mxu0 0
  %83 = vmatpush1.bf16.msra.mxu0 0
  %84 = vmatprep.subr.bf16.mxu0 0
  %85 = vmatpush1.bf16.msra.mxu0 0
  %86 = vmatprep.subr.bf16.mxu0 0
  %87 = vmatpush1.bf16.msra.mxu0 0
  %88 = vmatprep.subr.bf16.mxu0 0
  %89 = vmatpush1.bf16.msra.mxu0 0
  %90 = vmatprep.subr.bf16.mxu0 0
  %91 = vmatpush1.bf16.msra.mxu0 0
  %92 = vmatprep.subr.bf16.mxu0 %v67
  %93 = vmatpush1.bf16.msra.mxu0 %v66
  %94 = vmatprep.subr.bf16.mxu0 0
  %95 = vmatpush2.bf16.msra.mxu0 0
  %96 = vmatprep.subr.bf16.mxu0 0
  %97 = vmatpush2.bf16.msra.mxu0 0
  %98 = vmatprep.subr.bf16.mxu0 0
  %99 = vmatpush2.bf16.msra.mxu0 0
  %100 = vmatprep.subr.bf16.mxu0 0
  %101 = vmatpush2.bf16.msra.mxu0 0
  %102 = vmatprep.subr.bf16.mxu0 0
  %103 = vmatpush2.bf16.msra.mxu0 0
  %104 = vmatprep.subr.bf16.mxu0 0
  %105 = vmatpush2.bf16.msra.mxu0 0
  %106 = vmatprep.subr.bf16.mxu0 0
  %107 = vmatpush2.bf16.msra.mxu0 0
  %108 = vmatprep.subr.bf16.mxu0 0
  %109 = vmatpush2.bf16.msra.mxu0 0
  %110 = vmatprep.mubr.bf16.mxu0 0
  %111 = vmatmul.mubr.bf16.gmra.mxu0 %v76
  %v112 = vpop.f32.mrf.mxu0
  %v113 = vadd.f32 %v37, %v112
  %v114 = vpop.f32.mrf.mxu0
  %v115 = vadd.f32 %v41, %v114
  %v116 = vpop.f32.mrf.mxu0
  %v117 = vpop.f32.mrf.mxu0
  %118 = vdwg.mxu0
  %119 = vmatprep.subr.bf16.mxu0 0
  %120 = vmatpush1.bf16.msra.mxu0 0
  %121 = vmatprep.subr.bf16.mxu0 0
  %122 = vmatpush1.bf16.msra.mxu0 0
  %123 = vmatprep.subr.bf16.mxu0 0
  %124 = vmatpush1.bf16.msra.mxu0 0
  %125 = vmatprep.subr.bf16.mxu0 0
  %126 = vmatpush1.bf16.msra.mxu0 0
  %127 = vmatprep.subr.bf16.mxu0 0
  %128 = vmatpush1.bf16.msra.mxu0 0
  %129 = vmatprep.subr.bf16.mxu0 0
  %130 = vmatpush1.bf16.msra.mxu0 0
  %131 = vmatprep.subr.bf16.mxu0 0
  %132 = vmatpush1.bf16.msra.mxu0 0
  %133 = vmatprep.subr.bf16.mxu0 %v69
  %134 = vmatpush1.bf16.msra.mxu0 %v68
  %135 = vmatprep.subr.bf16.mxu0 0
  %136 = vmatpush2.bf16.msra.mxu0 0
  %137 = vmatprep.subr.bf16.mxu0 0
  %138 = vmatpush2.bf16.msra.mxu0 0
  %139 = vmatprep.subr.bf16.mxu0 0
  %140 = vmatpush2.bf16.msra.mxu0 0
  %141 = vmatprep.subr.bf16.mxu0 0
  %142 = vmatpush2.bf16.msra.mxu0 0
  %143 = vmatprep.subr.bf16.mxu0 0
  %144 = vmatpush2.bf16.msra.mxu0 0
  %145 = vmatprep.subr.bf16.mxu0 0
  %146 = vmatpush2.bf16.msra.mxu0 0
  %147 = vmatprep.subr.bf16.mxu0 0
  %148 = vmatpush2.bf16.msra.mxu0 0
  %149 = vmatprep.subr.bf16.mxu0 0
  %150 = vmatpush2.bf16.msra.mxu0 0
  %151 = vmatprep.mubr.bf16.mxu0 0
  %152 = vmatmul.mubr.bf16.gmra.mxu0 %v76
  %v153 = vpop.f32.mrf.mxu0
  %v154 = vadd.f32 %v45, %v153
  %v155 = vpop.f32.mrf.mxu0
  %v156 = vadd.f32 %v49, %v155
  %v157 = vpop.f32.mrf.mxu0
  %v158 = vpop.f32.mrf.mxu0
  %159 = vdwg.mxu0
  %v160 = vmax.f32 %v113, 0.0
  %v161 = vmax.f32 %v115, 0.0
  %v162 = vmax.f32 %v154, 0.0
  %v163 = vmax.f32 %v156, 0.0
  %v164 = vpack.c.bf16 %v160, %v160
  %v165 = vpack.c.bf16 %v161, %v161
  %v166 = vpack.c.bf16 %v162, %v162
  %v167 = vpack.c.bf16 %v163, %v163
  %v168 = vld [vmem:[%s3] sm:$0xff]
  %v169 = vld [vmem:[%s3 + $0x8] sm:$0xff]
  %v170 = vld [vmem:[%s3 + $0x10] sm:$0xff]
  %v171 = vld [vmem:[%s3 + $0x18] sm:$0xff]
  %v172 = vld [vmem:[%s3 + $0x20] sm:$0xff]
  %v173 = vld [vmem:[%s3 + $0x28] sm:$0xff]
  %v174 = vld [vmem:[%s3 + $0x30] sm:$0xff]
  %v175 = vld [vmem:[%s3 + $0x38] sm:$0xff]
  %v176 = vld [vmem:[%s3 + $0x40] sm:$0xff]
  %v177 = vld [vmem:[%s3 + $0x48] sm:$0xff]
  %v178 = vld [vmem:[%s3 + $0x50] sm:$0xff]
  %v179 = vld [vmem:[%s3 + $0x58] sm:$0xff]
  %v180 = vld [vmem:[%s3 + $0x60] sm:$0xff]
  %v181 = vld [vmem:[%s3 + $0x68] sm:$0xff]
  %v182 = vld [vmem:[%s3 + $0x70] sm:$0xff]
  %v183 = vld [vmem:[%s3 + $0x78] sm:$0xff]
  %v184 = vld [vmem:[%s3 + $0x80] sm:$0xff]
  %v185 = vld [vmem:[%s3 + $0x88] sm:$0xff]
  %v186 = vld [vmem:[%s3 + $0x90] sm:$0xff]
  %v187 = vld [vmem:[%s3 + $0x98] sm:$0xff]
  %v188 = vld [vmem:[%s3 + $0xa0] sm:$0xff]
  %v189 = vld [vmem:[%s3 + $0xa8] sm:$0xff]
  %v190 = vld [vmem:[%s3 + $0xb0] sm:$0xff]
  %v191 = vld [vmem:[%s3 + $0xb8] sm:$0xff]
  %v192 = vld [vmem:[%s3 + $0xc0] sm:$0xff]
  %v193 = vld [vmem:[%s3 + $0xc8] sm:$0xff]
  %v194 = vld [vmem:[%s3 + $0xd0] sm:$0xff]
  %v195 = vld [vmem:[%s3 + $0xd8] sm:$0xff]
  %v196 = vld [vmem:[%s3 + $0xe0] sm:$0xff]
  %v197 = vld [vmem:[%s3 + $0xe8] sm:$0xff]
  %v198 = vld [vmem:[%s3 + $0xf0] sm:$0xff]
  %v199 = vld [vmem:[%s3 + $0xf8] sm:$0xff]
  %v200 = vld [vmem:[%s3 + $0x100] sm:$0xff]
  %v201 = vld [vmem:[%s3 + $0x108] sm:$0xff]
  %v202 = vld [vmem:[%s3 + $0x110] sm:$0xff]
  %v203 = vld [vmem:[%s3 + $0x118] sm:$0xff]
  %v204 = vld [vmem:[%s3 + $0x120] sm:$0xff]
  %v205 = vld [vmem:[%s3 + $0x128] sm:$0xff]
  %v206 = vld [vmem:[%s3 + $0x130] sm:$0xff]
  %v207 = vld [vmem:[%s3 + $0x138] sm:$0xff]
  %v208 = vld [vmem:[%s3 + $0x140] sm:$0xff]
  %v209 = vld [vmem:[%s3 + $0x148] sm:$0xff]
  %v210 = vld [vmem:[%s3 + $0x150] sm:$0xff]
  %v211 = vld [vmem:[%s3 + $0x158] sm:$0xff]
  %v212 = vld [vmem:[%s3 + $0x160] sm:$0xff]
  %v213 = vld [vmem:[%s3 + $0x168] sm:$0xff]
  %v214 = vld [vmem:[%s3 + $0x170] sm:$0xff]
  %v215 = vld [vmem:[%s3 + $0x178] sm:$0xff]
  %v216 = vld [vmem:[%s3 + $0x180] sm:$0xff]
  %v217 = vld [vmem:[%s3 + $0x188] sm:$0xff]
  %v218 = vld [vmem:[%s3 + $0x190] sm:$0xff]
  %v219 = vld [vmem:[%s3 + $0x198] sm:$0xff]
  %v220 = vld [vmem:[%s3 + $0x1a0] sm:$0xff]
  %v221 = vld [vmem:[%s3 + $0x1a8] sm:$0xff]
  %v222 = vld [vmem:[%s3 + $0x1b0] sm:$0xff]
  %v223 = vld [vmem:[%s3 + $0x1b8] sm:$0xff]
  %v224 = vld [vmem:[%s3 + $0x1c0] sm:$0xff]
  %v225 = vld [vmem:[%s3 + $0x1c8] sm:$0xff]
  %v226 = vld [vmem:[%s3 + $0x1d0] sm:$0xff]
  %v227 = vld [vmem:[%s3 + $0x1d8] sm:$0xff]
  %v228 = vld [vmem:[%s3 + $0x1e0] sm:$0xff]
  %v229 = vld [vmem:[%s3 + $0x1e8] sm:$0xff]
  %v230 = vld [vmem:[%s3 + $0x1f0] sm:$0xff]
  %v231 = vld [vmem:[%s3 + $0x1f8] sm:$0xff]
  %v232 = vld [vmem:[%s3 + $0x200] sm:$0xff]
  %v233 = vld [vmem:[%s3 + $0x208] sm:$0xff]
  %v234 = vld [vmem:[%s3 + $0x210] sm:$0xff]
  %v235 = vld [vmem:[%s3 + $0x218] sm:$0xff]
  %v236 = vld [vmem:[%s3 + $0x220] sm:$0xff]
  %v237 = vld [vmem:[%s3 + $0x228] sm:$0xff]
  %v238 = vld [vmem:[%s3 + $0x230] sm:$0xff]
  %v239 = vld [vmem:[%s3 + $0x238] sm:$0xff]
  %v240 = vld [vmem:[%s3 + $0x240] sm:$0xff]
  %v241 = vld [vmem:[%s3 + $0x248] sm:$0xff]
  %v242 = vld [vmem:[%s3 + $0x250] sm:$0xff]
  %v243 = vld [vmem:[%s3 + $0x258] sm:$0xff]
  %v244 = vld [vmem:[%s3 + $0x260] sm:$0xff]
  %v245 = vld [vmem:[%s3 + $0x268] sm:$0xff]
  %v246 = vld [vmem:[%s3 + $0x270] sm:$0xff]
  %v247 = vld [vmem:[%s3 + $0x278] sm:$0xff]
  %v248 = vld [vmem:[%s3 + $0x280] sm:$0xff]
  %v249 = vld [vmem:[%s3 + $0x288] sm:$0xff]
  %v250 = vld [vmem:[%s3 + $0x290] sm:$0xff]
  %v251 = vld [vmem:[%s3 + $0x298] sm:$0xff]
  %v252 = vld [vmem:[%s3 + $0x2a0] sm:$0xff]
  %v253 = vld [vmem:[%s3 + $0x2a8] sm:$0xff]
  %v254 = vld [vmem:[%s3 + $0x2b0] sm:$0xff]
  %v255 = vld [vmem:[%s3 + $0x2b8] sm:$0xff]
  %v256 = vld [vmem:[%s3 + $0x2c0] sm:$0xff]
  %v257 = vld [vmem:[%s3 + $0x2c8] sm:$0xff]
  %v258 = vld [vmem:[%s3 + $0x2d0] sm:$0xff]
  %v259 = vld [vmem:[%s3 + $0x2d8] sm:$0xff]
  %v260 = vld [vmem:[%s3 + $0x2e0] sm:$0xff]
  %v261 = vld [vmem:[%s3 + $0x2e8] sm:$0xff]
  %v262 = vld [vmem:[%s3 + $0x2f0] sm:$0xff]
  %v263 = vld [vmem:[%s3 + $0x2f8] sm:$0xff]
  %v264 = vld [vmem:[%s3 + $0x300] sm:$0xff]
  %v265 = vld [vmem:[%s3 + $0x308] sm:$0xff]
  %v266 = vld [vmem:[%s3 + $0x310] sm:$0xff]
  %v267 = vld [vmem:[%s3 + $0x318] sm:$0xff]
  %v268 = vld [vmem:[%s3 + $0x320] sm:$0xff]
  %v269 = vld [vmem:[%s3 + $0x328] sm:$0xff]
  %v270 = vld [vmem:[%s3 + $0x330] sm:$0xff]
  %v271 = vld [vmem:[%s3 + $0x338] sm:$0xff]
  %v272 = vld [vmem:[%s3 + $0x340] sm:$0xff]
  %v273 = vld [vmem:[%s3 + $0x348] sm:$0xff]
  %v274 = vld [vmem:[%s3 + $0x350] sm:$0xff]
  %v275 = vld [vmem:[%s3 + $0x358] sm:$0xff]
  %v276 = vld [vmem:[%s3 + $0x360] sm:$0xff]
  %v277 = vld [vmem:[%s3 + $0x368] sm:$0xff]
  %v278 = vld [vmem:[%s3 + $0x370] sm:$0xff]
  %v279 = vld [vmem:[%s3 + $0x378] sm:$0xff]
  %v280 = vld [vmem:[%s3 + $0x380] sm:$0xff]
  %v281 = vld [vmem:[%s3 + $0x388] sm:$0xff]
  %v282 = vld [vmem:[%s3 + $0x390] sm:$0xff]
  %v283 = vld [vmem:[%s3 + $0x398] sm:$0xff]
  %v284 = vld [vmem:[%s3 + $0x3a0] sm:$0xff]
  %v285 = vld [vmem:[%s3 + $0x3a8] sm:$0xff]
  %v286 = vld [vmem:[%s3 + $0x3b0] sm:$0xff]
  %v287 = vld [vmem:[%s3 + $0x3b8] sm:$0xff]
  %v288 = vld [vmem:[%s3 + $0x3c0] sm:$0xff]
  %v289 = vld [vmem:[%s3 + $0x3c8] sm:$0xff]
  %v290 = vld [vmem:[%s3 + $0x3d0] sm:$0xff]
  %v291 = vld [vmem:[%s3 + $0x3d8] sm:$0xff]
  %v292 = vld [vmem:[%s3 + $0x3e0] sm:$0xff]
  %v293 = vld [vmem:[%s3 + $0x3e8] sm:$0xff]
  %v294 = vld [vmem:[%s3 + $0x3f0] sm:$0xff]
  %v295 = vld [vmem:[%s3 + $0x3f8] sm:$0xff]
  %v296 = vld [vmem:[%s4] sm:$0xf]
  %v298 = vlaneseq
  %v299 = vshrl.u32 %v298, 7
  %v300 = vsub.s32 0, %v299
  %v301 = vrot.slane %v296, %v300
  %v302 = vlaneseq
  %v303 = vshrl.u32 %v302, 7
  %v304 = vsub.s32 1, %v303
  %v305 = vrot.slane %v296, %v304
  %v306 = vlaneseq
  %v307 = vshrl.u32 %v306, 7
  %v308 = vsub.s32 2, %v307
  %v309 = vrot.slane %v296, %v308
  %v310 = vlaneseq
  %v311 = vshrl.u32 %v310, 7
  %v312 = vsub.s32 3, %v311
  %v313 = vrot.slane %v296, %v312
  %v446 = vunpack.c.l.b16 %v168
  %v447 = vunpack.c.h.b16 %v168
  %v448 = vunpack.c.l.b16 %v169
  %v449 = vunpack.c.h.b16 %v169
  %v450 = vunpack.c.l.b16 %v170
  %v451 = vunpack.c.h.b16 %v170
  %v452 = vunpack.c.l.b16 %v171
  %v453 = vunpack.c.h.b16 %v171
  %v454 = vunpack.c.l.b16 %v172
  %v455 = vunpack.c.h.b16 %v172
  %v456 = vunpack.c.l.b16 %v173
  %v457 = vunpack.c.h.b16 %v173
  %v458 = vunpack.c.l.b16 %v174
  %v459 = vunpack.c.h.b16 %v174
  %v460 = vunpack.c.l.b16 %v175
  %v461 = vunpack.c.h.b16 %v175
  %v462 = vunpack.c.l.b16 %v176
  %v463 = vunpack.c.h.b16 %v176
  %v464 = vunpack.c.l.b16 %v177
  %v465 = vunpack.c.h.b16 %v177
  %v466 = vunpack.c.l.b16 %v178
  %v467 = vunpack.c.h.b16 %v178
  %v468 = vunpack.c.l.b16 %v179
  %v469 = vunpack.c.h.b16 %v179
  %v470 = vunpack.c.l.b16 %v180
  %v471 = vunpack.c.h.b16 %v180
  %v472 = vunpack.c.l.b16 %v181
  %v473 = vunpack.c.h.b16 %v181
  %v474 = vunpack.c.l.b16 %v182
  %v475 = vunpack.c.h.b16 %v182
  %v476 = vunpack.c.l.b16 %v183
  %v477 = vunpack.c.h.b16 %v183
  %v478 = vunpack.c.l.b16 %v184
  %v479 = vunpack.c.h.b16 %v184
  %v480 = vunpack.c.l.b16 %v185
  %v481 = vunpack.c.h.b16 %v185
  %v482 = vunpack.c.l.b16 %v186
  %v483 = vunpack.c.h.b16 %v186
  %v484 = vunpack.c.l.b16 %v187
  %v485 = vunpack.c.h.b16 %v187
  %v486 = vunpack.c.l.b16 %v188
  %v487 = vunpack.c.h.b16 %v188
  %v488 = vunpack.c.l.b16 %v189
  %v489 = vunpack.c.h.b16 %v189
  %v490 = vunpack.c.l.b16 %v190
  %v491 = vunpack.c.h.b16 %v190
  %v492 = vunpack.c.l.b16 %v191
  %v493 = vunpack.c.h.b16 %v191
  %v494 = vunpack.c.l.b16 %v192
  %v495 = vunpack.c.h.b16 %v192
  %v496 = vunpack.c.l.b16 %v193
  %v497 = vunpack.c.h.b16 %v193
  %v498 = vunpack.c.l.b16 %v194
  %v499 = vunpack.c.h.b16 %v194
  %v500 = vunpack.c.l.b16 %v195
  %v501 = vunpack.c.h.b16 %v195
  %v502 = vunpack.c.l.b16 %v196
  %v503 = vunpack.c.h.b16 %v196
  %v504 = vunpack.c.l.b16 %v197
  %v505 = vunpack.c.h.b16 %v197
  %v506 = vunpack.c.l.b16 %v198
  %v507 = vunpack.c.h.b16 %v198
  %v508 = vunpack.c.l.b16 %v199
  %v509 = vunpack.c.h.b16 %v199
  %v510 = vunpack.c.l.b16 %v200
  %v511 = vunpack.c.h.b16 %v200
  %v512 = vunpack.c.l.b16 %v201
  %v513 = vunpack.c.h.b16 %v201
  %v514 = vunpack.c.l.b16 %v202
  %v515 = vunpack.c.h.b16 %v202
  %v516 = vunpack.c.l.b16 %v203
  %v517 = vunpack.c.h.b16 %v203
  %v518 = vunpack.c.l.b16 %v204
  %v519 = vunpack.c.h.b16 %v204
  %v520 = vunpack.c.l.b16 %v205
  %v521 = vunpack.c.h.b16 %v205
  %v522 = vunpack.c.l.b16 %v206
  %v523 = vunpack.c.h.b16 %v206
  %v524 = vunpack.c.l.b16 %v207
  %v525 = vunpack.c.h.b16 %v207
  %v526 = vunpack.c.l.b16 %v208
  %v527 = vunpack.c.h.b16 %v208
  %v528 = vunpack.c.l.b16 %v209
  %v529 = vunpack.c.h.b16 %v209
  %v530 = vunpack.c.l.b16 %v210
  %v531 = vunpack.c.h.b16 %v210
  %v532 = vunpack.c.l.b16 %v211
  %v533 = vunpack.c.h.b16 %v211
  %v534 = vunpack.c.l.b16 %v212
  %v535 = vunpack.c.h.b16 %v212
  %v536 = vunpack.c.l.b16 %v213
  %v537 = vunpack.c.h.b16 %v213
  %v538 = vunpack.c.l.b16 %v214
  %v539 = vunpack.c.h.b16 %v214
  %v540 = vunpack.c.l.b16 %v215
  %v541 = vunpack.c.h.b16 %v215
  %v542 = vunpack.c.l.b16 %v216
  %v543 = vunpack.c.h.b16 %v216
  %v544 = vunpack.c.l.b16 %v217
  %v545 = vunpack.c.h.b16 %v217
  %v546 = vunpack.c.l.b16 %v218
  %v547 = vunpack.c.h.b16 %v218
  %v548 = vunpack.c.l.b16 %v219
  %v549 = vunpack.c.h.b16 %v219
  %v550 = vunpack.c.l.b16 %v220
  %v551 = vunpack.c.h.b16 %v220
  %v552 = vunpack.c.l.b16 %v221
  %v553 = vunpack.c.h.b16 %v221
  %v554 = vunpack.c.l.b16 %v222
  %v555 = vunpack.c.h.b16 %v222
  %v556 = vunpack.c.l.b16 %v223
  %v557 = vunpack.c.h.b16 %v223
  %v558 = vunpack.c.l.b16 %v224
  %v559 = vunpack.c.h.b16 %v224
  %v560 = vunpack.c.l.b16 %v225
  %v561 = vunpack.c.h.b16 %v225
  %v562 = vunpack.c.l.b16 %v226
  %v563 = vunpack.c.h.b16 %v226
  %v564 = vunpack.c.l.b16 %v227
  %v565 = vunpack.c.h.b16 %v227
  %v566 = vunpack.c.l.b16 %v228
  %v567 = vunpack.c.h.b16 %v228
  %v568 = vunpack.c.l.b16 %v229
  %v569 = vunpack.c.h.b16 %v229
  %v570 = vunpack.c.l.b16 %v230
  %v571 = vunpack.c.h.b16 %v230
  %v572 = vunpack.c.l.b16 %v231
  %v573 = vunpack.c.h.b16 %v231
  %v574 = vunpack.c.l.b16 %v232
  %v575 = vunpack.c.h.b16 %v232
  %v576 = vunpack.c.l.b16 %v233
  %v577 = vunpack.c.h.b16 %v233
  %v578 = vunpack.c.l.b16 %v234
  %v579 = vunpack.c.h.b16 %v234
  %v580 = vunpack.c.l.b16 %v235
  %v581 = vunpack.c.h.b16 %v235
  %v582 = vunpack.c.l.b16 %v236
  %v583 = vunpack.c.h.b16 %v236
  %v584 = vunpack.c.l.b16 %v237
  %v585 = vunpack.c.h.b16 %v237
  %v586 = vunpack.c.l.b16 %v238
  %v587 = vunpack.c.h.b16 %v238
  %v588 = vunpack.c.l.b16 %v239
  %v589 = vunpack.c.h.b16 %v239
  %v590 = vunpack.c.l.b16 %v240
  %v591 = vunpack.c.h.b16 %v240
  %v592 = vunpack.c.l.b16 %v241
  %v593 = vunpack.c.h.b16 %v241
  %v594 = vunpack.c.l.b16 %v242
  %v595 = vunpack.c.h.b16 %v242
  %v596 = vunpack.c.l.b16 %v243
  %v597 = vunpack.c.h.b16 %v243
  %v598 = vunpack.c.l.b16 %v244
  %v599 = vunpack.c.h.b16 %v244
  %v600 = vunpack.c.l.b16 %v245
  %v601 = vunpack.c.h.b16 %v245
  %v602 = vunpack.c.l.b16 %v246
  %v603 = vunpack.c.h.b16 %v246
  %v604 = vunpack.c.l.b16 %v247
  %v605 = vunpack.c.h.b16 %v247
  %v606 = vunpack.c.l.b16 %v248
  %v607 = vunpack.c.h.b16 %v248
  %v608 = vunpack.c.l.b16 %v249
  %v609 = vunpack.c.h.b16 %v249
  %v610 = vunpack.c.l.b16 %v250
  %v611 = vunpack.c.h.b16 %v250
  %v612 = vunpack.c.l.b16 %v251
  %v613 = vunpack.c.h.b16 %v251
  %v614 = vunpack.c.l.b16 %v252
  %v615 = vunpack.c.h.b16 %v252
  %v616 = vunpack.c.l.b16 %v253
  %v617 = vunpack.c.h.b16 %v253
  %v618 = vunpack.c.l.b16 %v254
  %v619 = vunpack.c.h.b16 %v254
  %v620 = vunpack.c.l.b16 %v255
  %v621 = vunpack.c.h.b16 %v255
  %v622 = vunpack.c.l.b16 %v256
  %v623 = vunpack.c.h.b16 %v256
  %v624 = vunpack.c.l.b16 %v257
  %v625 = vunpack.c.h.b16 %v257
  %v626 = vunpack.c.l.b16 %v258
  %v627 = vunpack.c.h.b16 %v258
  %v628 = vunpack.c.l.b16 %v259
  %v629 = vunpack.c.h.b16 %v259
  %v630 = vunpack.c.l.b16 %v260
  %v631 = vunpack.c.h.b16 %v260
  %v632 = vunpack.c.l.b16 %v261
  %v633 = vunpack.c.h.b16 %v261
  %v634 = vunpack.c.l.b16 %v262
  %v635 = vunpack.c.h.b16 %v262
  %v636 = vunpack.c.l.b16 %v263
  %v637 = vunpack.c.h.b16 %v263
  %v638 = vunpack.c.l.b16 %v264
  %v639 = vunpack.c.h.b16 %v264
  %v640 = vunpack.c.l.b16 %v265
  %v641 = vunpack.c.h.b16 %v265
  %v642 = vunpack.c.l.b16 %v266
  %v643 = vunpack.c.h.b16 %v266
  %v644 = vunpack.c.l.b16 %v267
  %v645 = vunpack.c.h.b16 %v267
  %v646 = vunpack.c.l.b16 %v268
  %v647 = vunpack.c.h.b16 %v268
  %v648 = vunpack.c.l.b16 %v269
  %v649 = vunpack.c.h.b16 %v269
  %v650 = vunpack.c.l.b16 %v270
  %v651 = vunpack.c.h.b16 %v270
  %v652 = vunpack.c.l.b16 %v271
  %v653 = vunpack.c.h.b16 %v271
  %v654 = vunpack.c.l.b16 %v272
  %v655 = vunpack.c.h.b16 %v272
  %v656 = vunpack.c.l.b16 %v273
  %v657 = vunpack.c.h.b16 %v273
  %v658 = vunpack.c.l.b16 %v274
  %v659 = vunpack.c.h.b16 %v274
  %v660 = vunpack.c.l.b16 %v275
  %v661 = vunpack.c.h.b16 %v275
  %v662 = vunpack.c.l.b16 %v276
  %v663 = vunpack.c.h.b16 %v276
  %v664 = vunpack.c.l.b16 %v277
  %v665 = vunpack.c.h.b16 %v277
  %v666 = vunpack.c.l.b16 %v278
  %v667 = vunpack.c.h.b16 %v278
  %v668 = vunpack.c.l.b16 %v279
  %v669 = vunpack.c.h.b16 %v279
  %v670 = vunpack.c.l.b16 %v280
  %v671 = vunpack.c.h.b16 %v280
  %v672 = vunpack.c.l.b16 %v281
  %v673 = vunpack.c.h.b16 %v281
  %v674 = vunpack.c.l.b16 %v282
  %v675 = vunpack.c.h.b16 %v282
  %v676 = vunpack.c.l.b16 %v283
  %v677 = vunpack.c.h.b16 %v283
  %v678 = vunpack.c.l.b16 %v284
  %v679 = vunpack.c.h.b16 %v284
  %v680 = vunpack.c.l.b16 %v285
  %v681 = vunpack.c.h.b16 %v285
  %v682 = vunpack.c.l.b16 %v286
  %v683 = vunpack.c.h.b16 %v286
  %v684 = vunpack.c.l.b16 %v287
  %v685 = vunpack.c.h.b16 %v287
  %v686 = vunpack.c.l.b16 %v288
  %v687 = vunpack.c.h.b16 %v288
  %v688 = vunpack.c.l.b16 %v289
  %v689 = vunpack.c.h.b16 %v289
  %v690 = vunpack.c.l.b16 %v290
  %v691 = vunpack.c.h.b16 %v290
  %v692 = vunpack.c.l.b16 %v291
  %v693 = vunpack.c.h.b16 %v291
  %v694 = vunpack.c.l.b16 %v292
  %v695 = vunpack.c.h.b16 %v292
  %v696 = vunpack.c.l.b16 %v293
  %v697 = vunpack.c.h.b16 %v293
  %v698 = vunpack.c.l.b16 %v294
  %v699 = vunpack.c.h.b16 %v294
  %v700 = vunpack.c.l.b16 %v295
  %v701 = vunpack.c.h.b16 %v295
  %v702 = vpack.c.b16 %v450, %v446
  %v703 = vpack.c.b16 %v451, %v447
  %v704 = vpack.c.b16 %v452, %v448
  %v705 = vpack.c.b16 %v453, %v449
  %v706 = vpack.c.b16 %v458, %v454
  %v707 = vpack.c.b16 %v459, %v455
  %v708 = vpack.c.b16 %v460, %v456
  %v709 = vpack.c.b16 %v461, %v457
  %v710 = vpack.c.b16 %v466, %v462
  %v711 = vpack.c.b16 %v467, %v463
  %v712 = vpack.c.b16 %v468, %v464
  %v713 = vpack.c.b16 %v469, %v465
  %v714 = vpack.c.b16 %v474, %v470
  %v715 = vpack.c.b16 %v475, %v471
  %v716 = vpack.c.b16 %v476, %v472
  %v717 = vpack.c.b16 %v477, %v473
  %v718 = vpack.c.b16 %v482, %v478
  %v719 = vpack.c.b16 %v483, %v479
  %v720 = vpack.c.b16 %v484, %v480
  %v721 = vpack.c.b16 %v485, %v481
  %v722 = vpack.c.b16 %v490, %v486
  %v723 = vpack.c.b16 %v491, %v487
  %v724 = vpack.c.b16 %v492, %v488
  %v725 = vpack.c.b16 %v493, %v489
  %v726 = vpack.c.b16 %v498, %v494
  %v727 = vpack.c.b16 %v499, %v495
  %v728 = vpack.c.b16 %v500, %v496
  %v729 = vpack.c.b16 %v501, %v497
  %v730 = vpack.c.b16 %v506, %v502
  %v731 = vpack.c.b16 %v507, %v503
  %v732 = vpack.c.b16 %v508, %v504
  %v733 = vpack.c.b16 %v509, %v505
  %v734 = vpack.c.b16 %v514, %v510
  %v735 = vpack.c.b16 %v515, %v511
  %v736 = vpack.c.b16 %v516, %v512
  %v737 = vpack.c.b16 %v517, %v513
  %v738 = vpack.c.b16 %v522, %v518
  %v739 = vpack.c.b16 %v523, %v519
  %v740 = vpack.c.b16 %v524, %v520
  %v741 = vpack.c.b16 %v525, %v521
  %v742 = vpack.c.b16 %v530, %v526
  %v743 = vpack.c.b16 %v531, %v527
  %v744 = vpack.c.b16 %v532, %v528
  %v745 = vpack.c.b16 %v533, %v529
  %v746 = vpack.c.b16 %v538, %v534
  %v747 = vpack.c.b16 %v539, %v535
  %v748 = vpack.c.b16 %v540, %v536
  %v749 = vpack.c.b16 %v541, %v537
  %v750 = vpack.c.b16 %v546, %v542
  %v751 = vpack.c.b16 %v547, %v543
  %v752 = vpack.c.b16 %v548, %v544
  %v753 = vpack.c.b16 %v549, %v545
  %v754 = vpack.c.b16 %v554, %v550
  %v755 = vpack.c.b16 %v555, %v551
  %v756 = vpack.c.b16 %v556, %v552
  %v757 = vpack.c.b16 %v557, %v553
  %v758 = vpack.c.b16 %v562, %v558
  %v759 = vpack.c.b16 %v563, %v559
  %v760 = vpack.c.b16 %v564, %v560
  %v761 = vpack.c.b16 %v565, %v561
  %v762 = vpack.c.b16 %v570, %v566
  %v763 = vpack.c.b16 %v571, %v567
  %v764 = vpack.c.b16 %v572, %v568
  %v765 = vpack.c.b16 %v573, %v569
  %v766 = vpack.c.b16 %v578, %v574
  %v767 = vpack.c.b16 %v579, %v575
  %v768 = vpack.c.b16 %v580, %v576
  %v769 = vpack.c.b16 %v581, %v577
  %v770 = vpack.c.b16 %v586, %v582
  %v771 = vpack.c.b16 %v587, %v583
  %v772 = vpack.c.b16 %v588, %v584
  %v773 = vpack.c.b16 %v589, %v585
  %v774 = vpack.c.b16 %v594, %v590
  %v775 = vpack.c.b16 %v595, %v591
  %v776 = vpack.c.b16 %v596, %v592
  %v777 = vpack.c.b16 %v597, %v593
  %v778 = vpack.c.b16 %v602, %v598
  %v779 = vpack.c.b16 %v603, %v599
  %v780 = vpack.c.b16 %v604, %v600
  %v781 = vpack.c.b16 %v605, %v601
  %v782 = vpack.c.b16 %v610, %v606
  %v783 = vpack.c.b16 %v611, %v607
  %v784 = vpack.c.b16 %v612, %v608
  %v785 = vpack.c.b16 %v613, %v609
  %v786 = vpack.c.b16 %v618, %v614
  %v787 = vpack.c.b16 %v619, %v615
  %v788 = vpack.c.b16 %v620, %v616
  %v789 = vpack.c.b16 %v621, %v617
  %v790 = vpack.c.b16 %v626, %v622
  %v791 = vpack.c.b16 %v627, %v623
  %v792 = vpack.c.b16 %v628, %v624
  %v793 = vpack.c.b16 %v629, %v625
  %v794 = vpack.c.b16 %v634, %v630
  %v795 = vpack.c.b16 %v635, %v631
  %v796 = vpack.c.b16 %v636, %v632
  %v797 = vpack.c.b16 %v637, %v633
  %v798 = vpack.c.b16 %v642, %v638
  %v799 = vpack.c.b16 %v643, %v639
  %v800 = vpack.c.b16 %v644, %v640
  %v801 = vpack.c.b16 %v645, %v641
  %v802 = vpack.c.b16 %v650, %v646
  %v803 = vpack.c.b16 %v651, %v647
  %v804 = vpack.c.b16 %v652, %v648
  %v805 = vpack.c.b16 %v653, %v649
  %v806 = vpack.c.b16 %v658, %v654
  %v807 = vpack.c.b16 %v659, %v655
  %v808 = vpack.c.b16 %v660, %v656
  %v809 = vpack.c.b16 %v661, %v657
  %v810 = vpack.c.b16 %v666, %v662
  %v811 = vpack.c.b16 %v667, %v663
  %v812 = vpack.c.b16 %v668, %v664
  %v813 = vpack.c.b16 %v669, %v665
  %v814 = vpack.c.b16 %v674, %v670
  %v815 = vpack.c.b16 %v675, %v671
  %v816 = vpack.c.b16 %v676, %v672
  %v817 = vpack.c.b16 %v677, %v673
  %v818 = vpack.c.b16 %v682, %v678
  %v819 = vpack.c.b16 %v683, %v679
  %v820 = vpack.c.b16 %v684, %v680
  %v821 = vpack.c.b16 %v685, %v681
  %v822 = vpack.c.b16 %v690, %v686
  %v823 = vpack.c.b16 %v691, %v687
  %v824 = vpack.c.b16 %v692, %v688
  %v825 = vpack.c.b16 %v693, %v689
  %v826 = vpack.c.b16 %v698, %v694
  %v827 = vpack.c.b16 %v699, %v695
  %v828 = vpack.c.b16 %v700, %v696
  %v829 = vpack.c.b16 %v701, %v697
  %958 = vmatprep.subr.bf16.mxu0 %v731
  %959 = vmatpush1.bf16.msra.mxu0 %v730
  %960 = vmatprep.subr.bf16.mxu0 %v727
  %961 = vmatpush1.bf16.msra.mxu0 %v726
  %962 = vmatprep.subr.bf16.mxu0 %v723
  %963 = vmatpush1.bf16.msra.mxu0 %v722
  %964 = vmatprep.subr.bf16.mxu0 %v719
  %965 = vmatpush1.bf16.msra.mxu0 %v718
  %966 = vmatprep.subr.bf16.mxu0 %v715
  %967 = vmatpush1.bf16.msra.mxu0 %v714
  %968 = vmatprep.subr.bf16.mxu0 %v711
  %969 = vmatpush1.bf16.msra.mxu0 %v710
  %970 = vmatprep.subr.bf16.mxu0 %v707
  %971 = vmatpush1.bf16.msra.mxu0 %v706
  %972 = vmatprep.subr.bf16.mxu0 %v703
  %973 = vmatpush1.bf16.msra.mxu0 %v702
  %974 = vmatprep.subr.bf16.mxu0 %v763
  %975 = vmatpush2.bf16.msra.mxu0 %v762
  %976 = vmatprep.subr.bf16.mxu0 %v759
  %977 = vmatpush2.bf16.msra.mxu0 %v758
  %978 = vmatprep.subr.bf16.mxu0 %v755
  %979 = vmatpush2.bf16.msra.mxu0 %v754
  %980 = vmatprep.subr.bf16.mxu0 %v751
  %981 = vmatpush2.bf16.msra.mxu0 %v750
  %982 = vmatprep.subr.bf16.mxu0 %v747
  %983 = vmatpush2.bf16.msra.mxu0 %v746
  %984 = vmatprep.subr.bf16.mxu0 %v743
  %985 = vmatpush2.bf16.msra.mxu0 %v742
  %986 = vmatprep.subr.bf16.mxu0 %v739
  %987 = vmatpush2.bf16.msra.mxu0 %v738
  %988 = vmatprep.subr.bf16.mxu0 %v735
  %989 = vmatpush2.bf16.msra.mxu0 %v734
  %990 = vmatprep.mubr.bf16.mxu0 %v165
  %991 = vmatmul.mubr.bf16.gmra.mxu0 %v164
  %v992 = vpop.f32.mrf.mxu0
  %v993 = vadd.f32 %v301, %v992
  %v994 = vpop.f32.mrf.mxu0
  %v995 = vadd.f32 %v305, %v994
  %v996 = vpop.f32.mrf.mxu0
  %v997 = vpop.f32.mrf.mxu0
  %998 = vdwg.mxu0
  %999 = vmatprep.subr.bf16.mxu0 %v795
  %1000 = vmatpush1.bf16.msra.mxu0 %v794
  %1001 = vmatprep.subr.bf16.mxu0 %v791
  %1002 = vmatpush1.bf16.msra.mxu0 %v790
  %1003 = vmatprep.subr.bf16.mxu0 %v787
  %1004 = vmatpush1.bf16.msra.mxu0 %v786
  %1005 = vmatprep.subr.bf16.mxu0 %v783
  %1006 = vmatpush1.bf16.msra.mxu0 %v782
  %1007 = vmatprep.subr.bf16.mxu0 %v779
  %1008 = vmatpush1.bf16.msra.mxu0 %v778
  %1009 = vmatprep.subr.bf16.mxu0 %v775
  %1010 = vmatpush1.bf16.msra.mxu0 %v774
  %1011 = vmatprep.subr.bf16.mxu0 %v771
  %1012 = vmatpush1.bf16.msra.mxu0 %v770
  %1013 = vmatprep.subr.bf16.mxu0 %v767
  %1014 = vmatpush1.bf16.msra.mxu0 %v766
  %1015 = vmatprep.subr.bf16.mxu0 %v827
  %1016 = vmatpush2.bf16.msra.mxu0 %v826
  %1017 = vmatprep.subr.bf16.mxu0 %v823
  %1018 = vmatpush2.bf16.msra.mxu0 %v822
  %1019 = vmatprep.subr.bf16.mxu0 %v819
  %1020 = vmatpush2.bf16.msra.mxu0 %v818
  %1021 = vmatprep.subr.bf16.mxu0 %v815
  %1022 = vmatpush2.bf16.msra.mxu0 %v814
  %1023 = vmatprep.subr.bf16.mxu0 %v811
  %1024 = vmatpush2.bf16.msra.mxu0 %v810
  %1025 = vmatprep.subr.bf16.mxu0 %v807
  %1026 = vmatpush2.bf16.msra.mxu0 %v806
  %1027 = vmatprep.subr.bf16.mxu0 %v803
  %1028 = vmatpush2.bf16.msra.mxu0 %v802
  %1029 = vmatprep.subr.bf16.mxu0 %v799
  %1030 = vmatpush2.bf16.msra.mxu0 %v798
  %1031 = vmatprep.mubr.bf16.mxu0 %v167
  %1032 = vmatmul.mubr.bf16.gmra.mxu0 %v166
  %v1033 = vpop.f32.mrf.mxu0
  %v1034 = vadd.f32 %v993, %v1033
  %v1035 = vpop.f32.mrf.mxu0
  %v1036 = vadd.f32 %v995, %v1035
  %v1037 = vpop.f32.mrf.mxu0
  %v1038 = vpop.f32.mrf.mxu0
  %1039 = vdwg.mxu0
  %1040 = vmatprep.subr.bf16.mxu0 %v733
  %1041 = vmatpush1.bf16.msra.mxu0 %v732
  %1042 = vmatprep.subr.bf16.mxu0 %v729
  %1043 = vmatpush1.bf16.msra.mxu0 %v728
  %1044 = vmatprep.subr.bf16.mxu0 %v725
  %1045 = vmatpush1.bf16.msra.mxu0 %v724
  %1046 = vmatprep.subr.bf16.mxu0 %v721
  %1047 = vmatpush1.bf16.msra.mxu0 %v720
  %1048 = vmatprep.subr.bf16.mxu0 %v717
  %1049 = vmatpush1.bf16.msra.mxu0 %v716
  %1050 = vmatprep.subr.bf16.mxu0 %v713
  %1051 = vmatpush1.bf16.msra.mxu0 %v712
  %1052 = vmatprep.subr.bf16.mxu0 %v709
  %1053 = vmatpush1.bf16.msra.mxu0 %v708
  %1054 = vmatprep.subr.bf16.mxu0 %v705
  %1055 = vmatpush1.bf16.msra.mxu0 %v704
  %1056 = vmatprep.subr.bf16.mxu0 %v765
  %1057 = vmatpush2.bf16.msra.mxu0 %v764
  %1058 = vmatprep.subr.bf16.mxu0 %v761
  %1059 = vmatpush2.bf16.msra.mxu0 %v760
  %1060 = vmatprep.subr.bf16.mxu0 %v757
  %1061 = vmatpush2.bf16.msra.mxu0 %v756
  %1062 = vmatprep.subr.bf16.mxu0 %v753
  %1063 = vmatpush2.bf16.msra.mxu0 %v752
  %1064 = vmatprep.subr.bf16.mxu0 %v749
  %1065 = vmatpush2.bf16.msra.mxu0 %v748
  %1066 = vmatprep.subr.bf16.mxu0 %v745
  %1067 = vmatpush2.bf16.msra.mxu0 %v744
  %1068 = vmatprep.subr.bf16.mxu0 %v741
  %1069 = vmatpush2.bf16.msra.mxu0 %v740
  %1070 = vmatprep.subr.bf16.mxu0 %v737
  %1071 = vmatpush2.bf16.msra.mxu0 %v736
  %1072 = vmatprep.mubr.bf16.mxu0 %v165
  %1073 = vmatmul.mubr.bf16.gmra.mxu0 %v164
  %v1074 = vpop.f32.mrf.mxu0
  %v1075 = vadd.f32 %v309, %v1074
  %v1076 = vpop.f32.mrf.mxu0
  %v1077 = vadd.f32 %v313, %v1076
  %v1078 = vpop.f32.mrf.mxu0
  %v1079 = vpop.f32.mrf.mxu0
  %1080 = vdwg.mxu0
  %1081 = vmatprep.subr.bf16.mxu0 %v797
  %1082 = vmatpush1.bf16.msra.mxu0 %v796
  %1083 = vmatprep.subr.bf16.mxu0 %v793
  %1084 = vmatpush1.bf16.msra.mxu0 %v792
  %1085 = vmatprep.subr.bf16.mxu0 %v789
  %1086 = vmatpush1.bf16.msra.mxu0 %v788
  %1087 = vmatprep.subr.bf16.mxu0 %v785
  %1088 = vmatpush1.bf16.msra.mxu0 %v784
  %1089 = vmatprep.subr.bf16.mxu0 %v781
  %1090 = vmatpush1.bf16.msra.mxu0 %v780
  %1091 = vmatprep.subr.bf16.mxu0 %v777
  %1092 = vmatpush1.bf16.msra.mxu0 %v776
  %1093 = vmatprep.subr.bf16.mxu0 %v773
  %1094 = vmatpush1.bf16.msra.mxu0 %v772
  %1095 = vmatprep.subr.bf16.mxu0 %v769
  %1096 = vmatpush1.bf16.msra.mxu0 %v768
  %1097 = vmatprep.subr.bf16.mxu0 %v829
  %1098 = vmatpush2.bf16.msra.mxu0 %v828
  %1099 = vmatprep.subr.bf16.mxu0 %v825
  %1100 = vmatpush2.bf16.msra.mxu0 %v824
  %1101 = vmatprep.subr.bf16.mxu0 %v821
  %1102 = vmatpush2.bf16.msra.mxu0 %v820
  %1103 = vmatprep.subr.bf16.mxu0 %v817
  %1104 = vmatpush2.bf16.msra.mxu0 %v816
  %1105 = vmatprep.subr.bf16.mxu0 %v813
  %1106 = vmatpush2.bf16.msra.mxu0 %v812
  %1107 = vmatprep.subr.bf16.mxu0 %v809
  %1108 = vmatpush2.bf16.msra.mxu0 %v808
  %1109 = vmatprep.subr.bf16.mxu0 %v805
  %1110 = vmatpush2.bf16.msra.mxu0 %v804
  %1111 = vmatprep.subr.bf16.mxu0 %v801
  %1112 = vmatpush2.bf16.msra.mxu0 %v800
  %1113 = vmatprep.mubr.bf16.mxu0 %v167
  %1114 = vmatmul.mubr.bf16.gmra.mxu0 %v166
  %v1115 = vpop.f32.mrf.mxu0
  %v1116 = vadd.f32 %v1075, %v1115
  %v1117 = vpop.f32.mrf.mxu0
  %v1118 = vadd.f32 %v1077, %v1117
  %v1119 = vpop.f32.mrf.mxu0
  %v1120 = vpop.f32.mrf.mxu0
  %1121 = vdwg.mxu0
  %v1122 = vmax.f32 %v1034, 0.0
  %v1123 = vmax.f32 %v1036, 0.0
  %v1124 = vmax.f32 %v1116, 0.0
  %v1125 = vmax.f32 %v1118, 0.0
  %v1126 = vpack.c.bf16 %v1122, %v1122
  %v1127 = vpack.c.bf16 %v1123, %v1123
  %v1128 = vpack.c.bf16 %v1124, %v1124
  %v1129 = vpack.c.bf16 %v1125, %v1125
  %v1130 = vld [vmem:[%s5] sm:$0xf]
  %v1131 = vld [vmem:[%s5 + $0x4] sm:$0xf]
  %v1132 = vld [vmem:[%s5 + $0x8] sm:$0xf]
  %v1133 = vld [vmem:[%s5 + $0xc] sm:$0xf]
  %v1134 = vld [vmem:[%s5 + $0x10] sm:$0xf]
  %v1135 = vld [vmem:[%s5 + $0x14] sm:$0xf]
  %v1136 = vld [vmem:[%s5 + $0x18] sm:$0xf]
  %v1137 = vld [vmem:[%s5 + $0x1c] sm:$0xf]
  %v1138 = vld [vmem:[%s5 + $0x20] sm:$0xf]
  %v1139 = vld [vmem:[%s5 + $0x24] sm:$0xf]
  %v1140 = vld [vmem:[%s5 + $0x28] sm:$0xf]
  %v1141 = vld [vmem:[%s5 + $0x2c] sm:$0xf]
  %v1142 = vld [vmem:[%s5 + $0x30] sm:$0xf]
  %v1143 = vld [vmem:[%s5 + $0x34] sm:$0xf]
  %v1144 = vld [vmem:[%s5 + $0x38] sm:$0xf]
  %v1145 = vld [vmem:[%s5 + $0x3c] sm:$0xf]
  %v1146 = vld [vmem:[%s5 + $0x40] sm:$0xf]
  %v1147 = vld [vmem:[%s5 + $0x44] sm:$0xf]
  %v1148 = vld [vmem:[%s5 + $0x48] sm:$0xf]
  %v1149 = vld [vmem:[%s5 + $0x4c] sm:$0xf]
  %v1150 = vld [vmem:[%s5 + $0x50] sm:$0xf]
  %v1151 = vld [vmem:[%s5 + $0x54] sm:$0xf]
  %v1152 = vld [vmem:[%s5 + $0x58] sm:$0xf]
  %v1153 = vld [vmem:[%s5 + $0x5c] sm:$0xf]
  %v1154 = vld [vmem:[%s5 + $0x60] sm:$0xf]
  %v1155 = vld [vmem:[%s5 + $0x64] sm:$0xf]
  %v1156 = vld [vmem:[%s5 + $0x68] sm:$0xf]
  %v1157 = vld [vmem:[%s5 + $0x6c] sm:$0xf]
  %v1158 = vld [vmem:[%s5 + $0x70] sm:$0xf]
  %v1159 = vld [vmem:[%s5 + $0x74] sm:$0xf]
  %v1160 = vld [vmem:[%s5 + $0x78] sm:$0xf]
  %v1161 = vld [vmem:[%s5 + $0x7c] sm:$0xf]
  %v1162 = vld [vmem:[%s5 + $0x80] sm:$0xf]
  %v1163 = vld [vmem:[%s5 + $0x84] sm:$0xf]
  %v1164 = vld [vmem:[%s5 + $0x88] sm:$0xf]
  %v1165 = vld [vmem:[%s5 + $0x8c] sm:$0xf]
  %v1166 = vld [vmem:[%s5 + $0x90] sm:$0xf]
  %v1167 = vld [vmem:[%s5 + $0x94] sm:$0xf]
  %v1168 = vld [vmem:[%s5 + $0x98] sm:$0xf]
  %v1169 = vld [vmem:[%s5 + $0x9c] sm:$0xf]
  %v1170 = vld [vmem:[%s5 + $0xa0] sm:$0xf]
  %v1171 = vld [vmem:[%s5 + $0xa4] sm:$0xf]
  %v1172 = vld [vmem:[%s5 + $0xa8] sm:$0xf]
  %v1173 = vld [vmem:[%s5 + $0xac] sm:$0xf]
  %v1174 = vld [vmem:[%s5 + $0xb0] sm:$0xf]
  %v1175 = vld [vmem:[%s5 + $0xb4] sm:$0xf]
  %v1176 = vld [vmem:[%s5 + $0xb8] sm:$0xf]
  %v1177 = vld [vmem:[%s5 + $0xbc] sm:$0xf]
  %v1178 = vld [vmem:[%s5 + $0xc0] sm:$0xf]
  %v1179 = vld [vmem:[%s5 + $0xc4] sm:$0xf]
  %v1180 = vld [vmem:[%s5 + $0xc8] sm:$0xf]
  %v1181 = vld [vmem:[%s5 + $0xcc] sm:$0xf]
  %v1182 = vld [vmem:[%s5 + $0xd0] sm:$0xf]
  %v1183 = vld [vmem:[%s5 + $0xd4] sm:$0xf]
  %v1184 = vld [vmem:[%s5 + $0xd8] sm:$0xf]
  %v1185 = vld [vmem:[%s5 + $0xdc] sm:$0xf]
  %v1186 = vld [vmem:[%s5 + $0xe0] sm:$0xf]
  %v1187 = vld [vmem:[%s5 + $0xe4] sm:$0xf]
  %v1188 = vld [vmem:[%s5 + $0xe8] sm:$0xf]
  %v1189 = vld [vmem:[%s5 + $0xec] sm:$0xf]
  %v1190 = vld [vmem:[%s5 + $0xf0] sm:$0xf]
  %v1191 = vld [vmem:[%s5 + $0xf4] sm:$0xf]
  %v1192 = vld [vmem:[%s5 + $0xf8] sm:$0xf]
  %v1193 = vld [vmem:[%s5 + $0xfc] sm:$0xf]
  %v1194 = vld [vmem:[%s6] sm:$0x1]
  %v1196 = vlaneseq
  %v1197 = vshrl.u32 %v1196, 7
  %v1198 = vsub.s32 0, %v1197
  %v1199 = vrot.slane %v1194, %v1198
  %v1265 = vunpack.c.l.b16 %v1130
  %v1266 = vunpack.c.l.b16 %v1131
  %v1267 = vunpack.c.l.b16 %v1132
  %v1268 = vunpack.c.l.b16 %v1133
  %v1269 = vunpack.c.l.b16 %v1134
  %v1270 = vunpack.c.l.b16 %v1135
  %v1271 = vunpack.c.l.b16 %v1136
  %v1272 = vunpack.c.l.b16 %v1137
  %v1273 = vunpack.c.l.b16 %v1138
  %v1274 = vunpack.c.l.b16 %v1139
  %v1275 = vunpack.c.l.b16 %v1140
  %v1276 = vunpack.c.l.b16 %v1141
  %v1277 = vunpack.c.l.b16 %v1142
  %v1278 = vunpack.c.l.b16 %v1143
  %v1279 = vunpack.c.l.b16 %v1144
  %v1280 = vunpack.c.l.b16 %v1145
  %v1281 = vunpack.c.l.b16 %v1146
  %v1282 = vunpack.c.l.b16 %v1147
  %v1283 = vunpack.c.l.b16 %v1148
  %v1284 = vunpack.c.l.b16 %v1149
  %v1285 = vunpack.c.l.b16 %v1150
  %v1286 = vunpack.c.l.b16 %v1151
  %v1287 = vunpack.c.l.b16 %v1152
  %v1288 = vunpack.c.l.b16 %v1153
  %v1289 = vunpack.c.l.b16 %v1154
  %v1290 = vunpack.c.l.b16 %v1155
  %v1291 = vunpack.c.l.b16 %v1156
  %v1292 = vunpack.c.l.b16 %v1157
  %v1293 = vunpack.c.l.b16 %v1158
  %v1294 = vunpack.c.l.b16 %v1159
  %v1295 = vunpack.c.l.b16 %v1160
  %v1296 = vunpack.c.l.b16 %v1161
  %v1297 = vunpack.c.l.b16 %v1162
  %v1298 = vunpack.c.l.b16 %v1163
  %v1299 = vunpack.c.l.b16 %v1164
  %v1300 = vunpack.c.l.b16 %v1165
  %v1301 = vunpack.c.l.b16 %v1166
  %v1302 = vunpack.c.l.b16 %v1167
  %v1303 = vunpack.c.l.b16 %v1168
  %v1304 = vunpack.c.l.b16 %v1169
  %v1305 = vunpack.c.l.b16 %v1170
  %v1306 = vunpack.c.l.b16 %v1171
  %v1307 = vunpack.c.l.b16 %v1172
  %v1308 = vunpack.c.l.b16 %v1173
  %v1309 = vunpack.c.l.b16 %v1174
  %v1310 = vunpack.c.l.b16 %v1175
  %v1311 = vunpack.c.l.b16 %v1176
  %v1312 = vunpack.c.l.b16 %v1177
  %v1313 = vunpack.c.l.b16 %v1178
  %v1314 = vunpack.c.l.b16 %v1179
  %v1315 = vunpack.c.l.b16 %v1180
  %v1316 = vunpack.c.l.b16 %v1181
  %v1317 = vunpack.c.l.b16 %v1182
  %v1318 = vunpack.c.l.b16 %v1183
  %v1319 = vunpack.c.l.b16 %v1184
  %v1320 = vunpack.c.l.b16 %v1185
  %v1321 = vunpack.c.l.b16 %v1186
  %v1322 = vunpack.c.l.b16 %v1187
  %v1323 = vunpack.c.l.b16 %v1188
  %v1324 = vunpack.c.l.b16 %v1189
  %v1325 = vunpack.c.l.b16 %v1190
  %v1326 = vunpack.c.l.b16 %v1191
  %v1327 = vunpack.c.l.b16 %v1192
  %v1328 = vunpack.c.l.b16 %v1193
  %v1329 = vpack.c.b16 %v1266, %v1265
  %v1330 = vpack.c.b16 %v1268, %v1267
  %v1331 = vpack.c.b16 %v1270, %v1269
  %v1332 = vpack.c.b16 %v1272, %v1271
  %v1333 = vpack.c.b16 %v1274, %v1273
  %v1334 = vpack.c.b16 %v1276, %v1275
  %v1335 = vpack.c.b16 %v1278, %v1277
  %v1336 = vpack.c.b16 %v1280, %v1279
  %v1337 = vpack.c.b16 %v1282, %v1281
  %v1338 = vpack.c.b16 %v1284, %v1283
  %v1339 = vpack.c.b16 %v1286, %v1285
  %v1340 = vpack.c.b16 %v1288, %v1287
  %v1341 = vpack.c.b16 %v1290, %v1289
  %v1342 = vpack.c.b16 %v1292, %v1291
  %v1343 = vpack.c.b16 %v1294, %v1293
  %v1344 = vpack.c.b16 %v1296, %v1295
  %v1345 = vpack.c.b16 %v1298, %v1297
  %v1346 = vpack.c.b16 %v1300, %v1299
  %v1347 = vpack.c.b16 %v1302, %v1301
  %v1348 = vpack.c.b16 %v1304, %v1303
  %v1349 = vpack.c.b16 %v1306, %v1305
  %v1350 = vpack.c.b16 %v1308, %v1307
  %v1351 = vpack.c.b16 %v1310, %v1309
  %v1352 = vpack.c.b16 %v1312, %v1311
  %v1353 = vpack.c.b16 %v1314, %v1313
  %v1354 = vpack.c.b16 %v1316, %v1315
  %v1355 = vpack.c.b16 %v1318, %v1317
  %v1356 = vpack.c.b16 %v1320, %v1319
  %v1357 = vpack.c.b16 %v1322, %v1321
  %v1358 = vpack.c.b16 %v1324, %v1323
  %v1359 = vpack.c.b16 %v1326, %v1325
  %v1360 = vpack.c.b16 %v1328, %v1327
  %1393 = vmatprep.subr.bf16.mxu0 0
  %1394 = vmatpush1.bf16.msra.mxu0 %v1336
  %1395 = vmatprep.subr.bf16.mxu0 0
  %1396 = vmatpush1.bf16.msra.mxu0 %v1335
  %1397 = vmatprep.subr.bf16.mxu0 0
  %1398 = vmatpush1.bf16.msra.mxu0 %v1334
  %1399 = vmatprep.subr.bf16.mxu0 0
  %1400 = vmatpush1.bf16.msra.mxu0 %v1333
  %1401 = vmatprep.subr.bf16.mxu0 0
  %1402 = vmatpush1.bf16.msra.mxu0 %v1332
  %1403 = vmatprep.subr.bf16.mxu0 0
  %1404 = vmatpush1.bf16.msra.mxu0 %v1331
  %1405 = vmatprep.subr.bf16.mxu0 0
  %1406 = vmatpush1.bf16.msra.mxu0 %v1330
  %1407 = vmatprep.subr.bf16.mxu0 0
  %1408 = vmatpush1.bf16.msra.mxu0 %v1329
  %1409 = vmatprep.subr.bf16.mxu0 0
  %1410 = vmatpush2.bf16.msra.mxu0 %v1344
  %1411 = vmatprep.subr.bf16.mxu0 0
  %1412 = vmatpush2.bf16.msra.mxu0 %v1343
  %1413 = vmatprep.subr.bf16.mxu0 0
  %1414 = vmatpush2.bf16.msra.mxu0 %v1342
  %1415 = vmatprep.subr.bf16.mxu0 0
  %1416 = vmatpush2.bf16.msra.mxu0 %v1341
  %1417 = vmatprep.subr.bf16.mxu0 0
  %1418 = vmatpush2.bf16.msra.mxu0 %v1340
  %1419 = vmatprep.subr.bf16.mxu0 0
  %1420 = vmatpush2.bf16.msra.mxu0 %v1339
  %1421 = vmatprep.subr.bf16.mxu0 0
  %1422 = vmatpush2.bf16.msra.mxu0 %v1338
  %1423 = vmatprep.subr.bf16.mxu0 0
  %1424 = vmatpush2.bf16.msra.mxu0 %v1337
  %1425 = vmatprep.mubr.bf16.mxu0 %v1127
  %1426 = vmatmul.mubr.bf16.gmra.mxu0 %v1126
  %v1427 = vpop.f32.mrf.mxu0
  %v1428 = vadd.f32 %v1199, %v1427
  %v1429 = vpop.f32.mrf.mxu0
  %v1430 = vpop.f32.mrf.mxu0
  %v1431 = vpop.f32.mrf.mxu0
  %1432 = vdwg.mxu0
  %1433 = vmatprep.subr.bf16.mxu0 0
  %1434 = vmatpush1.bf16.msra.mxu0 %v1352
  %1435 = vmatprep.subr.bf16.mxu0 0
  %1436 = vmatpush1.bf16.msra.mxu0 %v1351
  %1437 = vmatprep.subr.bf16.mxu0 0
  %1438 = vmatpush1.bf16.msra.mxu0 %v1350
  %1439 = vmatprep.subr.bf16.mxu0 0
  %1440 = vmatpush1.bf16.msra.mxu0 %v1349
  %1441 = vmatprep.subr.bf16.mxu0 0
  %1442 = vmatpush1.bf16.msra.mxu0 %v1348
  %1443 = vmatprep.subr.bf16.mxu0 0
  %1444 = vmatpush1.bf16.msra.mxu0 %v1347
  %1445 = vmatprep.subr.bf16.mxu0 0
  %1446 = vmatpush1.bf16.msra.mxu0 %v1346
  %1447 = vmatprep.subr.bf16.mxu0 0
  %1448 = vmatpush1.bf16.msra.mxu0 %v1345
  %1449 = vmatprep.subr.bf16.mxu0 0
  %1450 = vmatpush2.bf16.msra.mxu0 %v1360
  %1451 = vmatprep.subr.bf16.mxu0 0
  %1452 = vmatpush2.bf16.msra.mxu0 %v1359
  %1453 = vmatprep.subr.bf16.mxu0 0
  %1454 = vmatpush2.bf16.msra.mxu0 %v1358
  %1455 = vmatprep.subr.bf16.mxu0 0
  %1456 = vmatpush2.bf16.msra.mxu0 %v1357
  %1457 = vmatprep.subr.bf16.mxu0 0
  %1458 = vmatpush2.bf16.msra.mxu0 %v1356
  %1459 = vmatprep.subr.bf16.mxu0 0
  %1460 = vmatpush2.bf16.msra.mxu0 %v1355
  %1461 = vmatprep.subr.bf16.mxu0 0
  %1462 = vmatpush2.bf16.msra.mxu0 %v1354
  %1463 = vmatprep.subr.bf16.mxu0 0
  %1464 = vmatpush2.bf16.msra.mxu0 %v1353
  %1465 = vmatprep.mubr.bf16.mxu0 %v1129
  %1466 = vmatmul.mubr.bf16.gmra.mxu0 %v1128
  %v1467 = vpop.f32.mrf.mxu0
  %v1468 = vadd.f32 %v1428, %v1467
  %v1469 = vpop.f32.mrf.mxu0
  %v1470 = vpop.f32.mrf.mxu0
  %v1471 = vpop.f32.mrf.mxu0
  %1472 = vdwg.mxu0
  %1473 = vst [vmem:[%s7] sm:$0xff] %v1468
  // Predicated region
  $region30: #{neural_network_forward.1} parent=0 // pred_check
    _
  $region31: #{neural_network_forward.1} parent=0 // pred_check_branch
    %1475 = sbr.rel (0) target = $region33
  $region32: #{neural_network_forward.1} parent=0 // pred_region
    _
  $region33: #{neural_network_forward.1} parent=0 // pred_fallthru
    _
  // Predicated region
  $region34: #{neural_network_forward.1} parent=0 // pred_check
    _
  $region35: #{neural_network_forward.1} parent=0 // pred_check_branch
    %1477 = sbr.rel (0) target = $region37
  $region36: #{neural_network_forward.1} parent=0 // pred_region
    _
  $region37: #{neural_network_forward.1} parent=0 // pred_fallthru
    _

</llo_original>
